<compile_context>
chip_gen: v7x
topology: tpu7x:2x2x1
jax: 0.10.0
libtpu: 0.0.40
codegen_flags: <defaults>
</compile_context>

<pallas_src>
import jax
import jax.numpy as jnp
from jax import lax
from jax.experimental import pallas as pl
from jax.experimental.pallas import tpu as pltpu


def _choose_token_block(seq_len):
    """Largest sequence tile (multiple of 8, <=256) that divides seq_len."""
    for t in (256, 128, 64, 32, 16, 8):
        if seq_len % t == 0:
            return t
    return seq_len  # fallback: one tile = whole (short / oddly sized) sequence


def word_pos_emb_kernel(ids_ref, word_ref, pos_ref, out_ref):
    # ids_ref : SMEM (B, S) int32 token ids (scalar prefetch)
    # word_ref: VMEM (V, E) full word-embedding table (resident across the grid)
    # pos_ref : VMEM (Ts, E) position-embedding rows for this sequence tile
    # out_ref : VMEM (Ts, E) output tile (batch dim squeezed by the BlockSpec)
    b = pl.program_id(0)
    j = pl.program_id(1)
    ts = out_ref.shape[0]
    base = j * ts

    def gather_add_row(t, carry):
        tok = ids_ref[b, base + t]                                   # SMEM scalar read
        w = word_ref[pl.ds(tok, 1), :].astype(jnp.float32)           # (1, E) VMEM gather
        p = pos_ref[pl.ds(t, 1), :].astype(jnp.float32)              # (1, E)
        out_ref[pl.ds(t, 1), :] = (w + p).astype(out_ref.dtype)
        return carry

    lax.fori_loop(0, ts, gather_add_row, 0, unroll=(ts <= 32))


def word_pos_embedding_forward(src, word_table, pos_table, dropout_p=0.1, seg=None):
    """src: (B, S) int ids -> (B, S, E) = word_table[src] + pos_table[:S] (dropout=identity)."""
    del seg  # unused, mirrors the `_` argument of the PyTorch forward
    B, S = src.shape
    V, E = word_table.shape
    max_len, E2 = pos_table.shape
    assert E == E2, "emb_size mismatch between word and position tables"
    assert S <= max_len, "sequence length exceeds max position-embedding length"

    Ts = _choose_token_block(S)
    grid = (B, S // Ts)

    ids = src.astype(jnp.int32)
    out_dtype = jnp.promote_types(word_table.dtype, pos_table.dtype)

    grid_spec = pltpu.PrefetchScalarGridSpec(
        num_scalar_prefetch=1,
        grid=grid,
        in_specs=[
            # Whole word table, constant block index -> DMA'd once, stays resident in VMEM.
            pl.BlockSpec((V, E), lambda b, j, ids_ref: (0, 0)),
            # Position rows for this sequence tile (positions are just arange(S)).
            pl.BlockSpec((Ts, E), lambda b, j, ids_ref: (j, 0)),
        ],
        # Batch dim squeezed; kernel writes a dense (Ts, E) tile per step.
        out_specs=pl.BlockSpec((None, Ts, E), lambda b, j, ids_ref: (b, j, 0)),
    )

    # Raise the scoped VMEM limit only if the resident table + tiles need it.
    itemsize = jnp.dtype(word_table.dtype).itemsize
    vmem_needed = (
        V * E * itemsize                                    # resident word table
        + 2 * Ts * E * jnp.dtype(pos_table.dtype).itemsize  # double-buffered pos tiles
        + 2 * Ts * E * jnp.dtype(out_dtype).itemsize        # double-buffered out tiles
        + (1 << 20)                                         # slack
    )
    cp_kwargs = dict(dimension_semantics=("parallel", "parallel"))
    if vmem_needed > (30 << 20):
        cp_kwargs["vmem_limit_bytes"] = int(min(vmem_needed * 5 // 4, 120 << 20))

    out = pl.pallas_call(
        word_pos_emb_kernel,
        out_shape=jax.ShapeDtypeStruct((B, S, E), out_dtype),
        grid_spec=grid_spec,
        compiler_params=pltpu.CompilerParams(**cp_kwargs),
    )(ids, word_table, pos_table)

    # Dropout: eval/inference mode -> identity (see TODO above for training mode).
    return out


def _reference(src, word_table, pos_table):
    S = src.shape[1]
    return word_table[src] + pos_table[:S][None, :, :]


if __name__ == "__main__":
    key = jax.random.PRNGKey(0)
    k1, k2, k3 = jax.random.split(key, 3)

    B, S, E, V = 2, 8, 32, 64          # small shapes consistent with the module
    MAX_LEN = 512
    word_table = 0.02 * jax.random.normal(k1, (V, E), jnp.float32)
    pos_table = 0.02 * jax.random.normal(k2, (MAX_LEN, E), jnp.float32)
    src = jax.random.randint(k3, (B, S), 0, V, dtype=jnp.int32)

    out = word_pos_embedding_forward(src, word_table, pos_table, dropout_p=0.1)
    out = jax.block_until_ready(out)

    ref = _reference(src, word_table, pos_table)
    assert out.shape == (B, S, E) and out.dtype == jnp.float32
    assert jnp.allclose(out, ref, atol=1e-6, rtol=1e-6)

    print("KERNEL_OK")
</pallas_src>

<mosaic_0001>
module attributes {stable_mosaic.version = 11 : i64} {
  func.func @word_pos_emb_kernel(%arg0: i32, %arg1: i32, %arg2: memref<2x8xi32, #tpu.memory_space<smem>>, %arg3: memref<64x32xf32, #tpu.memory_space<vmem>>, %arg4: memref<8x32xf32, #tpu.memory_space<vmem>>, %arg5: memref<1x8x32xf32, #tpu.memory_space<vmem>>) attributes {dimension_semantics = [#tpu.dimension_semantics<parallel>, #tpu.dimension_semantics<parallel>], iteration_bounds = array<i64: 2, 1>, scalar_prefetch = 1 : i64, scratch_operands = 0 : i64, tpu.core_type = #tpu.core_type<tc>, window_params = [{pipeline_mode = #tpu.pipeline_mode<synchronous>, transform_indices = @transform_0, window_bounds = array<i64: 64, 32>}, {transform_indices = @transform_1, window_bounds = array<i64: 8, 32>}, {transform_indices = @transform_2, window_bounds = array<i64: 1, 8, 32>}]} {
    %c8_i32 = arith.constant 8 : i32
    %0 = arith.muli %arg1, %c8_i32 : i32
    %c0_i32 = arith.constant 0 : i32
    %1 = arith.addi %0, %c0_i32 : i32
    %2 = arith.index_cast %arg0 : i32 to index
    %3 = arith.index_cast %1 : i32 to index
    %4 = memref.load %arg2[%2, %3] : memref<2x8xi32, #tpu.memory_space<smem>>
    %5 = arith.index_cast %4 : i32 to index
    %c0 = arith.constant 0 : index
    %6 = vector.load %arg3[%5, %c0] : memref<64x32xf32, #tpu.memory_space<vmem>>, vector<1x32xf32>
    %7 = arith.index_cast %c0_i32 : i32 to index
    %c0_0 = arith.constant 0 : index
    %8 = vector.load %arg4[%7, %c0_0] : memref<8x32xf32, #tpu.memory_space<vmem>>, vector<1x32xf32>
    %9 = arith.addf %6, %8 : vector<1x32xf32>
    %c0_1 = arith.constant 0 : index
    %10 = arith.index_cast %c0_i32 : i32 to index
    %c0_2 = arith.constant 0 : index
    %11 = vector.load %arg5[%c0_1, %10, %c0_2] : memref<1x8x32xf32, #tpu.memory_space<vmem>>, vector<1x1x32xf32>
    %12 = vector.shape_cast %11 : vector<1x1x32xf32> to vector<1x32xf32>
    %13 = vector.shape_cast %9 : vector<1x32xf32> to vector<1x1x32xf32>
    tpu.vector_store %arg5[%c0_1, %10, %c0_2], %13 {strides = array<i32>} : memref<1x8x32xf32, #tpu.memory_space<vmem>>, vector<1x1x32xf32>,
    %c1_i32 = arith.constant 1 : i32
    %14 = arith.addi %0, %c1_i32 : i32
    %15 = arith.index_cast %arg0 : i32 to index
    %16 = arith.index_cast %14 : i32 to index
    %17 = memref.load %arg2[%15, %16] : memref<2x8xi32, #tpu.memory_space<smem>>
    %18 = arith.index_cast %17 : i32 to index
    %c0_3 = arith.constant 0 : index
    %19 = vector.load %arg3[%18, %c0_3] : memref<64x32xf32, #tpu.memory_space<vmem>>, vector<1x32xf32>
    %20 = arith.index_cast %c1_i32 : i32 to index
    %c0_4 = arith.constant 0 : index
    %21 = vector.load %arg4[%20, %c0_4] : memref<8x32xf32, #tpu.memory_space<vmem>>, vector<1x32xf32>
    %22 = arith.addf %19, %21 : vector<1x32xf32>
    %c0_5 = arith.constant 0 : index
    %23 = arith.index_cast %c1_i32 : i32 to index
    %c0_6 = arith.constant 0 : index
    %24 = vector.load %arg5[%c0_5, %23, %c0_6] : memref<1x8x32xf32, #tpu.memory_space<vmem>>, vector<1x1x32xf32>
    %25 = vector.shape_cast %24 : vector<1x1x32xf32> to vector<1x32xf32>
    %26 = vector.shape_cast %22 : vector<1x32xf32> to vector<1x1x32xf32>
    tpu.vector_store %arg5[%c0_5, %23, %c0_6], %26 {strides = array<i32>} : memref<1x8x32xf32, #tpu.memory_space<vmem>>, vector<1x1x32xf32>,
    %c2_i32 = arith.constant 2 : i32
    %27 = arith.addi %0, %c2_i32 : i32
    %28 = arith.index_cast %arg0 : i32 to index
    %29 = arith.index_cast %27 : i32 to index
    %30 = memref.load %arg2[%28, %29] : memref<2x8xi32, #tpu.memory_space<smem>>
    %31 = arith.index_cast %30 : i32 to index
    %c0_7 = arith.constant 0 : index
    %32 = vector.load %arg3[%31, %c0_7] : memref<64x32xf32, #tpu.memory_space<vmem>>, vector<1x32xf32>
    %33 = arith.index_cast %c2_i32 : i32 to index
    %c0_8 = arith.constant 0 : index
    %34 = vector.load %arg4[%33, %c0_8] : memref<8x32xf32, #tpu.memory_space<vmem>>, vector<1x32xf32>
    %35 = arith.addf %32, %34 : vector<1x32xf32>
    %c0_9 = arith.constant 0 : index
    %36 = arith.index_cast %c2_i32 : i32 to index
    %c0_10 = arith.constant 0 : index
    %37 = vector.load %arg5[%c0_9, %36, %c0_10] : memref<1x8x32xf32, #tpu.memory_space<vmem>>, vector<1x1x32xf32>
    %38 = vector.shape_cast %37 : vector<1x1x32xf32> to vector<1x32xf32>
    %39 = vector.shape_cast %35 : vector<1x32xf32> to vector<1x1x32xf32>
    tpu.vector_store %arg5[%c0_9, %36, %c0_10], %39 {strides = array<i32>} : memref<1x8x32xf32, #tpu.memory_space<vmem>>, vector<1x1x32xf32>,
    %c3_i32 = arith.constant 3 : i32
    %40 = arith.addi %0, %c3_i32 : i32
    %41 = arith.index_cast %arg0 : i32 to index
    %42 = arith.index_cast %40 : i32 to index
    %43 = memref.load %arg2[%41, %42] : memref<2x8xi32, #tpu.memory_space<smem>>
    %44 = arith.index_cast %43 : i32 to index
    %c0_11 = arith.constant 0 : index
    %45 = vector.load %arg3[%44, %c0_11] : memref<64x32xf32, #tpu.memory_space<vmem>>, vector<1x32xf32>
    %46 = arith.index_cast %c3_i32 : i32 to index
    %c0_12 = arith.constant 0 : index
    %47 = vector.load %arg4[%46, %c0_12] : memref<8x32xf32, #tpu.memory_space<vmem>>, vector<1x32xf32>
    %48 = arith.addf %45, %47 : vector<1x32xf32>
    %c0_13 = arith.constant 0 : index
    %49 = arith.index_cast %c3_i32 : i32 to index
    %c0_14 = arith.constant 0 : index
    %50 = vector.load %arg5[%c0_13, %49, %c0_14] : memref<1x8x32xf32, #tpu.memory_space<vmem>>, vector<1x1x32xf32>
    %51 = vector.shape_cast %50 : vector<1x1x32xf32> to vector<1x32xf32>
    %52 = vector.shape_cast %48 : vector<1x32xf32> to vector<1x1x32xf32>
    tpu.vector_store %arg5[%c0_13, %49, %c0_14], %52 {strides = array<i32>} : memref<1x8x32xf32, #tpu.memory_space<vmem>>, vector<1x1x32xf32>,
    %c4_i32 = arith.constant 4 : i32
    %53 = arith.addi %0, %c4_i32 : i32
    %54 = arith.index_cast %arg0 : i32 to index
    %55 = arith.index_cast %53 : i32 to index
    %56 = memref.load %arg2[%54, %55] : memref<2x8xi32, #tpu.memory_space<smem>>
    %57 = arith.index_cast %56 : i32 to index
    %c0_15 = arith.constant 0 : index
    %58 = vector.load %arg3[%57, %c0_15] : memref<64x32xf32, #tpu.memory_space<vmem>>, vector<1x32xf32>
    %59 = arith.index_cast %c4_i32 : i32 to index
    %c0_16 = arith.constant 0 : index
    %60 = vector.load %arg4[%59, %c0_16] : memref<8x32xf32, #tpu.memory_space<vmem>>, vector<1x32xf32>
    %61 = arith.addf %58, %60 : vector<1x32xf32>
    %c0_17 = arith.constant 0 : index
    %62 = arith.index_cast %c4_i32 : i32 to index
    %c0_18 = arith.constant 0 : index
    %63 = vector.load %arg5[%c0_17, %62, %c0_18] : memref<1x8x32xf32, #tpu.memory_space<vmem>>, vector<1x1x32xf32>
    %64 = vector.shape_cast %63 : vector<1x1x32xf32> to vector<1x32xf32>
    %65 = vector.shape_cast %61 : vector<1x32xf32> to vector<1x1x32xf32>
    tpu.vector_store %arg5[%c0_17, %62, %c0_18], %65 {strides = array<i32>} : memref<1x8x32xf32, #tpu.memory_space<vmem>>, vector<1x1x32xf32>,
    %c5_i32 = arith.constant 5 : i32
    %66 = arith.addi %0, %c5_i32 : i32
    %67 = arith.index_cast %arg0 : i32 to index
    %68 = arith.index_cast %66 : i32 to index
    %69 = memref.load %arg2[%67, %68] : memref<2x8xi32, #tpu.memory_space<smem>>
    %70 = arith.index_cast %69 : i32 to index
    %c0_19 = arith.constant 0 : index
    %71 = vector.load %arg3[%70, %c0_19] : memref<64x32xf32, #tpu.memory_space<vmem>>, vector<1x32xf32>
    %72 = arith.index_cast %c5_i32 : i32 to index
    %c0_20 = arith.constant 0 : index
    %73 = vector.load %arg4[%72, %c0_20] : memref<8x32xf32, #tpu.memory_space<vmem>>, vector<1x32xf32>
    %74 = arith.addf %71, %73 : vector<1x32xf32>
    %c0_21 = arith.constant 0 : index
    %75 = arith.index_cast %c5_i32 : i32 to index
    %c0_22 = arith.constant 0 : index
    %76 = vector.load %arg5[%c0_21, %75, %c0_22] : memref<1x8x32xf32, #tpu.memory_space<vmem>>, vector<1x1x32xf32>
    %77 = vector.shape_cast %76 : vector<1x1x32xf32> to vector<1x32xf32>
    %78 = vector.shape_cast %74 : vector<1x32xf32> to vector<1x1x32xf32>
    tpu.vector_store %arg5[%c0_21, %75, %c0_22], %78 {strides = array<i32>} : memref<1x8x32xf32, #tpu.memory_space<vmem>>, vector<1x1x32xf32>,
    %c6_i32 = arith.constant 6 : i32
    %79 = arith.addi %0, %c6_i32 : i32
    %80 = arith.index_cast %arg0 : i32 to index
    %81 = arith.index_cast %79 : i32 to index
    %82 = memref.load %arg2[%80, %81] : memref<2x8xi32, #tpu.memory_space<smem>>
    %83 = arith.index_cast %82 : i32 to index
    %c0_23 = arith.constant 0 : index
    %84 = vector.load %arg3[%83, %c0_23] : memref<64x32xf32, #tpu.memory_space<vmem>>, vector<1x32xf32>
    %85 = arith.index_cast %c6_i32 : i32 to index
    %c0_24 = arith.constant 0 : index
    %86 = vector.load %arg4[%85, %c0_24] : memref<8x32xf32, #tpu.memory_space<vmem>>, vector<1x32xf32>
    %87 = arith.addf %84, %86 : vector<1x32xf32>
    %c0_25 = arith.constant 0 : index
    %88 = arith.index_cast %c6_i32 : i32 to index
    %c0_26 = arith.constant 0 : index
    %89 = vector.load %arg5[%c0_25, %88, %c0_26] : memref<1x8x32xf32, #tpu.memory_space<vmem>>, vector<1x1x32xf32>
    %90 = vector.shape_cast %89 : vector<1x1x32xf32> to vector<1x32xf32>
    %91 = vector.shape_cast %87 : vector<1x32xf32> to vector<1x1x32xf32>
    tpu.vector_store %arg5[%c0_25, %88, %c0_26], %91 {strides = array<i32>} : memref<1x8x32xf32, #tpu.memory_space<vmem>>, vector<1x1x32xf32>,
    %c7_i32 = arith.constant 7 : i32
    %92 = arith.addi %0, %c7_i32 : i32
    %93 = arith.index_cast %arg0 : i32 to index
    %94 = arith.index_cast %92 : i32 to index
    %95 = memref.load %arg2[%93, %94] : memref<2x8xi32, #tpu.memory_space<smem>>
    %96 = arith.index_cast %95 : i32 to index
    %c0_27 = arith.constant 0 : index
    %97 = vector.load %arg3[%96, %c0_27] : memref<64x32xf32, #tpu.memory_space<vmem>>, vector<1x32xf32>
    %98 = arith.index_cast %c7_i32 : i32 to index
    %c0_28 = arith.constant 0 : index
    %99 = vector.load %arg4[%98, %c0_28] : memref<8x32xf32, #tpu.memory_space<vmem>>, vector<1x32xf32>
    %100 = arith.addf %97, %99 : vector<1x32xf32>
    %c0_29 = arith.constant 0 : index
    %101 = arith.index_cast %c7_i32 : i32 to index
    %c0_30 = arith.constant 0 : index
    %102 = vector.load %arg5[%c0_29, %101, %c0_30] : memref<1x8x32xf32, #tpu.memory_space<vmem>>, vector<1x1x32xf32>
    %103 = vector.shape_cast %102 : vector<1x1x32xf32> to vector<1x32xf32>
    %104 = vector.shape_cast %100 : vector<1x32xf32> to vector<1x1x32xf32>
    tpu.vector_store %arg5[%c0_29, %101, %c0_30], %104 {strides = array<i32>} : memref<1x8x32xf32, #tpu.memory_space<vmem>>, vector<1x1x32xf32>,
    %c8_i32_31 = arith.constant 8 : i32
    return
  }
  func.func @transform_0(%arg0: i32, %arg1: i32, %arg2: memref<2x8xi32, #tpu.memory_space<smem>>) -> (i32, i32) {
    %c0_i32 = arith.constant 0 : i32
    %c0_i32_0 = arith.constant 0 : i32
    %c0_i32_1 = arith.constant 0 : i32
    return %c0_i32, %c0_i32_0 : i32, i32
  }
  func.func @transform_1(%arg0: i32, %arg1: i32, %arg2: memref<2x8xi32, #tpu.memory_space<smem>>) -> (i32, i32) {
    %c0_i32 = arith.constant 0 : i32
    %c0_i32_0 = arith.constant 0 : i32
    return %arg1, %c0_i32 : i32, i32
  }
  func.func @transform_2(%arg0: i32, %arg1: i32, %arg2: memref<2x8xi32, #tpu.memory_space<smem>>) -> (i32, i32, i32) {
    %c0_i32 = arith.constant 0 : i32
    %c0_i32_0 = arith.constant 0 : i32
    return %arg0, %arg1, %c0_i32 : i32, i32, i32
  }
}

</mosaic_0001>

<llo_original>
// kernel: tpu_custom_call.1
$region0: #{tpu_custom_call.1}
  #allocation0 [shape = 'u32[]', space=smem, size = 0x4, offset = 0x4, fixed_abs, tag = 'smem constant byte address 0x4 - core index']
  #allocation1 [shape = 'u32[144,128]{1,0:T(1,128)}', space=vmem, size = 0x12000, scoped, tag = 'internal scratch']
  #allocation2 [shape = 's32[1]{0}', space=sflag, size = 0x4, scoped, tag = 'scoped memory for tpu_custom_call.1']
  #allocation3 [shape = 'u8[1024]{0}', space=smem, size = 0x400, scoped, tag = 'prefetched SMEM operand 0']
  %s0 = inlined_call_operand.vmem [shape: s32[2,8], index: 0, kind: input, shape index: {}]
  %s1 = inlined_call_operand.vmem [shape: f32[64,32], index: 1, kind: input, shape index: {}]
  %s2 = inlined_call_operand.vmem [shape: f32[512,32], index: 2, kind: input, shape index: {}]
  %s3 = inlined_call_operand.hbm [shape: f32[2,8,32], index: 3, kind: output, shape index: {}]
  %s4 = sld [smem:[#allocation0]]
  $region41: #{tpu_custom_call.1} parent=0
    _
  %s6 = ssub.s32 1, %s4
  %s7 = scalar_select 0, %s6, %s4
  %s8 = sshll.u32 %s0, 4
  %s9 = int_to_ptr.vmem [resolvable:$true] %s8
  %11 = dma.vmem_to_smem %s9, 32, [#allocation3], [#allocation2]
  %12 = dma.done [#allocation2], 32
  %13 = sfence
  $region1: #{tpu_custom_call.1} parent=0
    #allocation4 [shape = 'u8[8192]{0}', space=vmem, size = 0x2000, scoped, tag = 'output window, operand 0']
    #allocation5 [shape = 's32[2]{0}', space=sflag, size = 0x8, scoped, tag = 'scoped memory for tpu_custom_call.1']
    %14 = vsyncpa [#allocation5], 0
    %s15 = scalar_lea.sflag [#allocation5], 1
    %16 = vsyncpa %s15, 0
    loop: start=0, step=1, limit=4
    $region2: #{tpu_custom_call.1} parent=1 // loop_pre_header
      _
    $region3: #{tpu_custom_call.1} parent=1 // loop_header
      %s18 = sphi 0, %s22
      %p19 = scmp.ge.s32.totalorder %s18, 4
      %s25 = sphi 0, %s37
      %s26 = sphi 0, %s33
      %s27 = sphi 0, %s25
      %s28 = sphi 0, %s26
      %s29 = sphi 0, %s27
      %s30 = sphi 0, %s28
      %s38 = sphi 0, %s38
      %s40 = sphi 0, %s38
      %s41 = sphi 0, %s40
      %s55 = sphi 0, %s41
      %s61 = sphi 0, %s63
      %s64 = sphi 0, %s61
      %s65 = sphi 0, %s64
      %s81 = sphi 0, %s65
      %s89 = sphi 0, %s91
      %s92 = sphi 0, %s89
      %s93 = sphi 0, %s92
      %s109 = sphi 0, %s93
    $region4: #{tpu_custom_call.1} parent=1 // loop_header_branch
      %21 = sbr.rel (%p19) target = $region8
    $region5: #{tpu_custom_call.1} parent=1 // loop_body
      %s23 = ssub.s32 %s18, 1
      %s24 = ssub.s32 %s18, 2
      %s31 = sadd.s32 1, %s26
      %p32 = scmp.ge.s32.totalorder %s31, 1
      %s33 = scalar_select %p32, 0, %s31
      %s34 = sadd.s32 1, %s25
      %s35 = scalar_select %p32, %s34, %s25
      %p36 = scmp.ge.s32.totalorder %s35, 2
      %s37 = scalar_select %p36, 0, %s35
      %s39 = sadd.s32 %s38, 1
      %p42 = scmp.eq.s32.totalorder %s18, 1
      %p43 = scmp.ne.s32.totalorder %s38, %s40
      %p44 = scmp.eq.s32.totalorder %s18, 0
      %p45 = por %p43, %p44
      %p46 = scmp.ne.s32.totalorder %s38, %s40
      %p47 = scmp.eq.s32.totalorder %s23, 1
      %p48 = por %p46, %p47
      %p49 = scmp.ne.s32.totalorder %s40, %s41
      %p50 = scmp.eq.s32.totalorder %s23, 0
      %p51 = por %p49, %p50
      %p52 = scmp.ne.s32.totalorder %s40, %s41
      %p53 = scmp.eq.s32.totalorder %s24, 1
      %p54 = por %p52, %p53
      %p56 = scmp.ne.s32.totalorder %s41, %s55
      %p57 = scmp.eq.s32.totalorder %s24, 0
      %p58 = por %p56, %p57
      %s59 = ssub.s32 %s26, %s33
      %p60 = scmp.eq.s32.totalorder %s59, 0
      %s62 = sadd.s32 %s61, 1
      %s63 = scalar_select %p60, %s61, %s62
      %p66 = pneg %p60
      %p67 = scmp.eq.s32.totalorder %s18, 1
      %p68 = por %p66, %p67
      %p69 = scmp.ne.s32.totalorder %s61, %s64
      %p70 = scmp.eq.s32.totalorder %s18, 0
      %p71 = por %p69, %p70
      %p72 = scmp.ne.s32.totalorder %s61, %s64
      %p73 = scmp.eq.s32.totalorder %s23, 1
      %p74 = por %p72, %p73
      %p75 = scmp.ne.s32.totalorder %s64, %s65
      %p76 = scmp.eq.s32.totalorder %s23, 0
      %p77 = por %p75, %p76
      %p78 = scmp.ne.s32.totalorder %s64, %s65
      %p79 = scmp.eq.s32.totalorder %s24, 1
      %p80 = por %p78, %p79
      %p82 = scmp.ne.s32.totalorder %s65, %s81
      %p83 = scmp.eq.s32.totalorder %s24, 0
      %p84 = por %p82, %p83
      %s85 = ssub.s32 %s25, %s37
      %s86 = ssub.s32 %s26, %s33
      %s87 = sor.u32 %s85, %s86
      %p88 = scmp.eq.s32.totalorder %s87, 0
      %s90 = sadd.s32 %s89, 1
      %s91 = scalar_select %p88, %s89, %s90
      %p94 = pneg %p88
      %p95 = scmp.eq.s32.totalorder %s18, 1
      %p96 = por %p94, %p95
      %p97 = scmp.ne.s32.totalorder %s89, %s92
      %p98 = scmp.eq.s32.totalorder %s18, 0
      %p99 = por %p97, %p98
      %p100 = scmp.ne.s32.totalorder %s89, %s92
      %p101 = scmp.eq.s32.totalorder %s23, 1
      %p102 = por %p100, %p101
      %p103 = scmp.ne.s32.totalorder %s92, %s93
      %p104 = scmp.eq.s32.totalorder %s23, 0
      %p105 = por %p103, %p104
      %p106 = scmp.ne.s32.totalorder %s92, %s93
      %p107 = scmp.eq.s32.totalorder %s24, 1
      %p108 = por %p106, %p107
      %p110 = scmp.ne.s32.totalorder %s93, %s109
      %p111 = scmp.eq.s32.totalorder %s24, 0
      %p112 = por %p110, %p111
      %p113 = scmp.le.s32.totalorder 1, %s18
      %p114 = scmp.lt.s32.totalorder %s18, 3
      %p115 = pnand %p113, %p114
      %p116 = pneg %p115
      // Predicated region
      $region9: #{tpu_custom_call.1} parent=5 // pred_check
        _
      $region10: #{tpu_custom_call.1} parent=5 // pred_check_branch
        %118 = sbr.rel (%p115) target = $region12
      $region11: #{tpu_custom_call.1} parent=5 // pred_region
        %s119 = ssub.s32 %s18, 1
        // Predicated region
        $region13: #{tpu_custom_call.1} parent=11 // pred_check
          %p120 = pneg %p51
        $region14: #{tpu_custom_call.1} parent=11 // pred_check_branch
          %122 = sbr.rel (%p120) target = $region16
        $region15: #{tpu_custom_call.1} parent=11 // pred_region
          _
        $region16: #{tpu_custom_call.1} parent=11 // pred_fallthru
          _
        // Predicated region
        $region17: #{tpu_custom_call.1} parent=11 // pred_check
          %p123 = pneg %p77
        $region18: #{tpu_custom_call.1} parent=11 // pred_check_branch
          %125 = sbr.rel (%p123) target = $region20
        $region19: #{tpu_custom_call.1} parent=11 // pred_region
          %p126 = scmp.lt.s32.totalorder %s28, 63
          %s127 = scalar_select %p126, %s28, 63
          %s128 = smul.addr %s127, 8
          %s129 = scalar_lea.vmem %s2, %s128
        $region20: #{tpu_custom_call.1} parent=11 // pred_fallthru
          _
      $region12: #{tpu_custom_call.1} parent=5 // pred_fallthru
        _
      %p130 = scmp.lt.s32.totalorder %s18, 2
      // Predicated region
      $region21: #{tpu_custom_call.1} parent=5 // pred_check
        %p131 = pneg %p130
      $region22: #{tpu_custom_call.1} parent=5 // pred_check_branch
        %133 = sbr.rel (%p131) target = $region24
      $region23: #{tpu_custom_call.1} parent=5 // pred_region
        _
      $region24: #{tpu_custom_call.1} parent=5 // pred_fallthru
        _
      %p134 = scmp.le.s32.totalorder 1, %s18
      %p135 = scmp.lt.s32.totalorder %s18, 3
      %p136 = pnand %p134, %p135
      %p137 = pneg %p136
      // Predicated region
      $region25: #{tpu_custom_call.1} parent=5 // pred_check
        _
      $region26: #{tpu_custom_call.1} parent=5 // pred_check_branch
        %139 = sbr.rel (%p136) target = $region28
      $region27: #{tpu_custom_call.1} parent=5 // pred_region
        %s140 = ssub.s32 %s18, 1
        %p141 = pneg %p51
        %p142 = pneg %p48
        %p143 = scmp.lt.s32.totalorder %s28, 63
        %s144 = scalar_select %p143, %s28, 63
        %s145 = smul.addr %s144, 8
        %s146 = scalar_lea.vmem %s2, %s145
        %p147 = pneg %p77
        %p148 = pneg %p74
        %p149 = pneg %p105
        %p150 = pneg %p102
        %s151 = sand.u32 %s92, 1
        %s152 = scalar_lea.sflag [#allocation5], %s151
        %s153 = sand.u32 %s92, 1
        %s154 = smul.addr %s153, 8
        %s155 = scalar_lea.vmem [#allocation4], %s154
        %p156 = scmp.lt.s32.totalorder %s28, 63
        %s157 = scalar_select %p156, %s28, 63
        %s158 = smul.addr %s157, 8
        %s159 = scalar_lea.vmem %s2, %s158
        %s160 = smul.u32 %s28, 8
        %s161 = sshra.s32 %s160, 7
        %s162 = sand.u32 %s160, 127
        %s163 = sadd.s32 %s161, %s27
        %s164 = smul.u32 %s163, 128
        %s165 = sshra.s32 %s160, 7
        %s166 = sand.u32 %s160, 127
        %s167 = sadd.s32 %s164, %s166
        %s168 = sld [smem:[#allocation3 + %s167]]
        %s169 = scalar_lea.vmem %s1, %s168
        %v170 = vld [vmem:[%s169] sm:$0x1]
        %v171 = vld [vmem:[%s159] sm:$0x1]
        %v172 = vadd.f32 %v170, %v171
        %vm173 = vcmask 253952
        %174 = vst.msk [vmem:[%s155] sm:$0x1] %vm173, %v172
        %s175 = sadd.s32 %s160, 1
        %s176 = sshra.s32 %s175, 7
        %s177 = sand.u32 %s175, 127
        %s178 = sadd.s32 %s176, %s27
        %s179 = smul.u32 %s178, 128
        %s180 = sshra.s32 %s175, 7
        %s181 = sand.u32 %s175, 127
        %s182 = sadd.s32 %s179, %s181
        %s183 = sld [smem:[#allocation3 + %s182]]
        %s184 = scalar_lea.vmem %s1, %s183
        %v185 = vld [vmem:[%s184] sm:$0x1]
        %v186 = vld [vmem:[%s159 + $0x1] sm:$0x1]
        %v187 = vadd.f32 %v185, %v186
        %188 = vst.msk [vmem:[%s155 + $0x1] sm:$0x1] %vm173, %v187
        %s189 = sadd.s32 %s160, 2
        %s190 = sshra.s32 %s189, 7
        %s191 = sand.u32 %s189, 127
        %s192 = sadd.s32 %s190, %s27
        %s193 = smul.u32 %s192, 128
        %s194 = sshra.s32 %s189, 7
        %s195 = sand.u32 %s189, 127
        %s196 = sadd.s32 %s193, %s195
        %s197 = sld [smem:[#allocation3 + %s196]]
        %s198 = scalar_lea.vmem %s1, %s197
        %v199 = vld [vmem:[%s198] sm:$0x1]
        %v200 = vld [vmem:[%s159 + $0x2] sm:$0x1]
        %v201 = vadd.f32 %v199, %v200
        %202 = vst.msk [vmem:[%s155 + $0x2] sm:$0x1] %vm173, %v201
        %s203 = sadd.s32 %s160, 3
        %s204 = sshra.s32 %s203, 7
        %s205 = sand.u32 %s203, 127
        %s206 = sadd.s32 %s204, %s27
        %s207 = smul.u32 %s206, 128
        %s208 = sshra.s32 %s203, 7
        %s209 = sand.u32 %s203, 127
        %s210 = sadd.s32 %s207, %s209
        %s211 = sld [smem:[#allocation3 + %s210]]
        %s212 = scalar_lea.vmem %s1, %s211
        %v213 = vld [vmem:[%s212] sm:$0x1]
        %v214 = vld [vmem:[%s159 + $0x3] sm:$0x1]
        %v215 = vadd.f32 %v213, %v214
        %216 = vst.msk [vmem:[%s155 + $0x3] sm:$0x1] %vm173, %v215
        %s217 = sadd.s32 %s160, 4
        %s218 = sshra.s32 %s217, 7
        %s219 = sand.u32 %s217, 127
        %s220 = sadd.s32 %s218, %s27
        %s221 = smul.u32 %s220, 128
        %s222 = sshra.s32 %s217, 7
        %s223 = sand.u32 %s217, 127
        %s224 = sadd.s32 %s221, %s223
        %s225 = sld [smem:[#allocation3 + %s224]]
        %s226 = scalar_lea.vmem %s1, %s225
        %v227 = vld [vmem:[%s226] sm:$0x1]
        %v228 = vld [vmem:[%s159 + $0x4] sm:$0x1]
        %v229 = vadd.f32 %v227, %v228
        %230 = vst.msk [vmem:[%s155 + $0x4] sm:$0x1] %vm173, %v229
        %s231 = sadd.s32 %s160, 5
        %s232 = sshra.s32 %s231, 7
        %s233 = sand.u32 %s231, 127
        %s234 = sadd.s32 %s232, %s27
        %s235 = smul.u32 %s234, 128
        %s236 = sshra.s32 %s231, 7
        %s237 = sand.u32 %s231, 127
        %s238 = sadd.s32 %s235, %s237
        %s239 = sld [smem:[#allocation3 + %s238]]
        %s240 = scalar_lea.vmem %s1, %s239
        %v241 = vld [vmem:[%s240] sm:$0x1]
        %v242 = vld [vmem:[%s159 + $0x5] sm:$0x1]
        %v243 = vadd.f32 %v241, %v242
        %244 = vst.msk [vmem:[%s155 + $0x5] sm:$0x1] %vm173, %v243
        %s245 = sadd.s32 %s160, 6
        %s246 = sshra.s32 %s245, 7
        %s247 = sand.u32 %s245, 127
        %s248 = sadd.s32 %s246, %s27
        %s249 = smul.u32 %s248, 128
        %s250 = sshra.s32 %s245, 7
        %s251 = sand.u32 %s245, 127
        %s252 = sadd.s32 %s249, %s251
        %s253 = sld [smem:[#allocation3 + %s252]]
        %s254 = scalar_lea.vmem %s1, %s253
        %v255 = vld [vmem:[%s254] sm:$0x1]
        %v256 = vld [vmem:[%s159 + $0x6] sm:$0x1]
        %v257 = vadd.f32 %v255, %v256
        %258 = vst.msk [vmem:[%s155 + $0x6] sm:$0x1] %vm173, %v257
        %s259 = sadd.s32 %s160, 7
        %s260 = sshra.s32 %s259, 7
        %s261 = sand.u32 %s259, 127
        %s262 = sadd.s32 %s260, %s27
        %s263 = smul.u32 %s262, 128
        %s264 = sshra.s32 %s259, 7
        %s265 = sand.u32 %s259, 127
        %s266 = sadd.s32 %s263, %s265
        %s267 = sld [smem:[#allocation3 + %s266]]
        %s268 = scalar_lea.vmem %s1, %s267
        %v269 = vld [vmem:[%s268] sm:$0x1]
        %v270 = vld [vmem:[%s159 + $0x7] sm:$0x1]
        %v271 = vadd.f32 %v269, %v270
        %272 = vst.msk [vmem:[%s155 + $0x7] sm:$0x1] %vm173, %v271
        %s273 = sand.u32 %s92, 1
        %s274 = scalar_lea.sflag [#allocation5], %s273
        %s275 = sand.u32 %s92, 1
        %s276 = smul.addr %s275, 8
        %s277 = scalar_lea.vmem [#allocation4], %s276
        // Predicated region
        $region29: #{tpu_custom_call.1} parent=27 // pred_check
          %p278 = pneg %p102
        $region30: #{tpu_custom_call.1} parent=27 // pred_check_branch
          %280 = sbr.rel (%p278) target = $region32
        $region31: #{tpu_custom_call.1} parent=27 // pred_region
          %s282 = ssub.s32 128, 128
          %283 = vsyncadd %s274, %s282
          %s284 = sadd.s32 %s28, %s27
          %s285 = smul.addr %s284, 128
          %s286 = scalar_lea.hbm %s3, %s285
          %s288 = sshll.u32 %s277, 4
          %s289 = int_to_ptr.vmem [resolvable:$true] %s288
          %291 = dma.vmem_to_hbm [thread:$0]  %s289, 128, %s286, %s274
        $region32: #{tpu_custom_call.1} parent=27 // pred_fallthru
          _
      $region28: #{tpu_custom_call.1} parent=5 // pred_fallthru
        _
      %p292 = scmp.le.s32.totalorder 2, %s18
      // Predicated region
      $region33: #{tpu_custom_call.1} parent=5 // pred_check
        %p293 = pneg %p292
      $region34: #{tpu_custom_call.1} parent=5 // pred_check_branch
        %295 = sbr.rel (%p293) target = $region36
      $region35: #{tpu_custom_call.1} parent=5 // pred_region
        %s296 = ssub.s32 %s18, 2
        // Predicated region
        $region37: #{tpu_custom_call.1} parent=35 // pred_check
          %p297 = pneg %p108
        $region38: #{tpu_custom_call.1} parent=35 // pred_check_branch
          %299 = sbr.rel (%p297) target = $region40
        $region39: #{tpu_custom_call.1} parent=35 // pred_region
          %s300 = sand.u32 %s93, 1
          %s301 = scalar_lea.sflag [#allocation5], %s300
          %s302 = sand.u32 %s93, 1
          %s303 = smul.addr %s302, 8
          %s304 = scalar_lea.vmem [#allocation4], %s303
          %305 = dma.done %s301, 128
        $region40: #{tpu_custom_call.1} parent=35 // pred_fallthru
          _
      $region36: #{tpu_custom_call.1} parent=5 // pred_fallthru
        _
    $region6: #{tpu_custom_call.1} parent=1 // loop_footer
      %s22 = sadd.s32 1, %s18
    $region7: #{tpu_custom_call.1} parent=1 // loop_footer_branch
      %17 = sbr.rel target = $region3
    $region8: #{tpu_custom_call.1} parent=1 // loop_exit
      _
    %306 = vsyncpa [#allocation5], 1
    %s307 = scalar_lea.sflag [#allocation5], 1
    %308 = vsyncpa %s307, 1

</llo_original>
